<compile_context>
chip_gen: v6e
topology: v6e:2x2x1
jax: 0.10.0
libtpu: 0.0.40
codegen_flags: <defaults>
</compile_context>

<pallas_src>
import functools

import jax
import jax.numpy as jnp
from jax.experimental import pallas as pl
from jax.experimental.pallas import tpu as pltpu

_LANES = 128
# 2048 rows * 128 lanes * 4 B = 1 MiB per f32 block; 2 inputs * 2 buffers =
# 4 MiB, comfortably inside the default scoped-VMEM limit on v5e/v6e/v7x.
_MAX_TILE_ROWS = 2048


def _sse_partial_kernel(pred_ref, h_ref, out_ref, *, valid_rows, needs_mask):
    """Per-block partial sum of squared errors, reduced to an (8,128) vreg."""
    d = pred_ref[...].astype(jnp.float32) - h_ref[...].astype(jnp.float32)

    if needs_mask:
        # Last block may extend past the array; zero out the invalid rows.
        block_rows = d.shape[0]
        row0 = pl.program_id(0) * block_rows
        row_idx = jax.lax.broadcasted_iota(jnp.int32, d.shape, 0) + row0
        d = jnp.where(row_idx < valid_rows, d, 0.0)

    dsq = d * d
    # (block_rows, 128) -> (block_rows//8, 8, 128); the reduce over the
    # leading axis is pure vreg-wise VALU adds (no XLU, no scalar store).
    out_ref[...] = dsq.reshape(dsq.shape[0] // 8, 8, _LANES).sum(axis=0)


def pinn_loss(prediction: jax.Array, h_data: jax.Array) -> jax.Array:
    """sum((prediction - h_data)**2), computed in a Pallas TPU kernel."""
    pred = prediction.reshape(-1)
    h = h_data.reshape(-1)
    assert pred.shape == h.shape, "prediction and h_data must match in size"
    n = pred.shape[0]

    # Lane-dense 2D view.  Only pad (by at most 127 elements) when n is not a
    # multiple of 128; identical zero padding contributes exactly 0 to the SSE.
    n_pad = pl.cdiv(n, _LANES) * _LANES
    if n_pad != n:
        pred = jnp.pad(pred, (0, n_pad - n))
        h = jnp.pad(h, (0, n_pad - n))
    total_rows = n_pad // _LANES
    pred2 = pred.reshape(total_rows, _LANES)
    h2 = h.reshape(total_rows, _LANES)

    # Block sizing: big tiles, but never grossly larger than the array.
    block_rows = min(_MAX_TILE_ROWS, pl.cdiv(total_rows, 8) * 8)
    num_blocks = pl.cdiv(total_rows, block_rows)
    needs_mask = (num_blocks * block_rows) != total_rows

    kernel = functools.partial(
        _sse_partial_kernel, valid_rows=total_rows, needs_mask=needs_mask
    )

    itemsize = jnp.dtype(pred2.dtype).itemsize
    bytes_accessed = 2 * n_pad * itemsize + num_blocks * 8 * _LANES * 4

    partials = pl.pallas_call(
        kernel,
        out_shape=jax.ShapeDtypeStruct((num_blocks * 8, _LANES), jnp.float32),
        grid=(num_blocks,),
        in_specs=[
            pl.BlockSpec((block_rows, _LANES), lambda i: (i, 0)),
            pl.BlockSpec((block_rows, _LANES), lambda i: (i, 0)),
        ],
        # Each block writes its own lane-dense (8,128) partial -> parallel axis.
        out_specs=pl.BlockSpec((8, _LANES), lambda i: (i, 0)),
        compiler_params=pltpu.CompilerParams(
            dimension_semantics=("parallel",)
        ),
        cost_estimate=pl.CostEstimate(
            flops=3 * n_pad,
            transcendentals=0,
            bytes_accessed=bytes_accessed,
        ),
    )(pred2, h2)

    # Final tiny reduction (num_blocks * 8 * 128 floats) handled by XLA.
    return jnp.sum(partials)


if __name__ == "__main__":
    key = jax.random.PRNGKey(0)
    k1, k2 = jax.random.split(key)

    # Shapes consistent with the module: "500data" -> 500 sampled observation
    # points, each a scalar field value, shaped (N, 1).
    N = 500
    h_data_choose = jax.random.normal(k1, (N, 1), dtype=jnp.float32)
    prediction = jax.random.normal(k2, (N, 1), dtype=jnp.float32)

    loss = pinn_loss(prediction, h_data_choose)
    jax.block_until_ready(loss)

    # Reference check (plain JAX) for correctness.
    ref = jnp.sum(jnp.square(prediction - h_data_choose))
    assert jnp.allclose(loss, ref, rtol=1e-5, atol=1e-5), (loss, ref)

    print("KERNEL_OK")
</pallas_src>

<mosaic_0001>
module attributes {stable_mosaic.version = 11 : i64} {
  func.func @_sse_partial_kernel(%arg0: i32, %arg1: memref<8x128xf32, #tpu.memory_space<vmem>>, %arg2: memref<8x128xf32, #tpu.memory_space<vmem>>, %arg3: memref<8x128xf32, #tpu.memory_space<vmem>>) attributes {dimension_semantics = [#tpu.dimension_semantics<parallel>], iteration_bounds = array<i64: 1>, scalar_prefetch = 0 : i64, scratch_operands = 0 : i64, tpu.core_type = #tpu.core_type<tc>, window_params = [{transform_indices = @transform_0, window_bounds = array<i64: 8, 128>}, {transform_indices = @transform_1, window_bounds = array<i64: 8, 128>}, {transform_indices = @transform_2, window_bounds = array<i64: 8, 128>}]} {
    %c0 = arith.constant 0 : index
    %c0_0 = arith.constant 0 : index
    %0 = vector.load %arg1[%c0, %c0_0] : memref<8x128xf32, #tpu.memory_space<vmem>>, vector<8x128xf32>
    %c0_1 = arith.constant 0 : index
    %c0_2 = arith.constant 0 : index
    %1 = vector.load %arg2[%c0_1, %c0_2] : memref<8x128xf32, #tpu.memory_space<vmem>>, vector<8x128xf32>
    %2 = arith.subf %0, %1 : vector<8x128xf32>
    %c8_i32 = arith.constant 8 : i32
    %3 = arith.muli %arg0, %c8_i32 : i32
    %4 = tpu.iota {dimensions = array<i32: 0>} : vector<8x128xi32>
    %5 = vector.broadcast %3 : i32 to vector<8x128xi32>
    %6 = arith.addi %4, %5 : vector<8x128xi32>
    %c4_i32 = arith.constant 4 : i32
    %7 = vector.broadcast %c4_i32 : i32 to vector<8x128xi32>
    %8 = arith.cmpi slt, %6, %7 : vector<8x128xi32>
    %cst = arith.constant 0.000000e+00 : f32
    %9 = vector.broadcast %cst : f32 to vector<8x128xf32>
    %10 = arith.select %8, %2, %9 : vector<8x128xi1>, vector<8x128xf32>
    %11 = arith.mulf %10, %10 : vector<8x128xf32>
    %12 = vector.shape_cast %11 : vector<8x128xf32> to vector<1x8x128xf32>
    %cst_3 = arith.constant dense<0.000000e+00> : vector<8x128xf32>
    %13 = vector.multi_reduction <add>, %12, %cst_3 [0] : vector<1x8x128xf32> to vector<8x128xf32>
    %c0_4 = arith.constant 0 : index
    %c0_5 = arith.constant 0 : index
    %14 = vector.load %arg3[%c0_4, %c0_5] : memref<8x128xf32, #tpu.memory_space<vmem>>, vector<8x128xf32>
    tpu.vector_store %arg3[%c0_4, %c0_5], %13 {strides = array<i32>} : memref<8x128xf32, #tpu.memory_space<vmem>>, vector<8x128xf32>,
    return
  }
  func.func @transform_0(%arg0: i32) -> (i32, i32) {
    %c0_i32 = arith.constant 0 : i32
    %c0_i32_0 = arith.constant 0 : i32
    return %arg0, %c0_i32 : i32, i32
  }
  func.func @transform_1(%arg0: i32) -> (i32, i32) {
    %c0_i32 = arith.constant 0 : i32
    %c0_i32_0 = arith.constant 0 : i32
    return %arg0, %c0_i32 : i32, i32
  }
  func.func @transform_2(%arg0: i32) -> (i32, i32) {
    %c0_i32 = arith.constant 0 : i32
    %c0_i32_0 = arith.constant 0 : i32
    return %arg0, %c0_i32 : i32, i32
  }
}

</mosaic_0001>

<llo_original>
// kernel: tpu_custom_call.1
$region0: #{tpu_custom_call.1}
  #allocation0 [shape = 'u32[]', space=smem, size = 0x4, offset = 0x4, fixed_abs, tag = 'smem constant byte address 0x4 - core index']
  #allocation1 [shape = 'u32[144,128]{1,0:T(1,128)}', space=vmem, size = 0x12000, scoped, tag = 'internal scratch']
  %s0 = inlined_call_operand.hbm [shape: f32[4,128], index: 0, kind: input, shape index: {}]
  %s1 = inlined_call_operand.hbm [shape: f32[4,128], index: 1, kind: input, shape index: {}]
  %s2 = inlined_call_operand.hbm [shape: f32[8,128], index: 2, kind: output, shape index: {}]
  %s3 = sld [smem:[#allocation0]]
  $region26: #{tpu_custom_call.1} parent=0
    _
  %s5 = ssub.s32 1, %s3
  %s6 = scalar_select 0, %s5, %s3
  $region1: #{tpu_custom_call.1} parent=0
    #allocation2 [shape = 'u8[4096]{0}', space=vmem, size = 0x1000, scoped, tag = 'input window, operand 0, single buffered']
    #allocation3 [shape = 's32[1]{0}', space=sflag, size = 0x4, scoped, tag = 'scoped memory for tpu_custom_call.1']
    #allocation4 [shape = 's32[1]{0}', space=sflag, size = 0x4, scoped, tag = 'scoped memory for tpu_custom_call.1']
    #allocation5 [shape = 'u8[4096]{0}', space=vmem, size = 0x1000, scoped, tag = 'input window, operand 1, single buffered']
    #allocation6 [shape = 's32[1]{0}', space=sflag, size = 0x4, scoped, tag = 'scoped memory for tpu_custom_call.1']
    #allocation7 [shape = 'u8[4096]{0}', space=vmem, size = 0x1000, scoped, tag = 'output window, operand 0, single buffered']
    %7 = vsyncpa [#allocation3], 0
    %8 = vsyncpa [#allocation6], 0
    %9 = vsyncpa [#allocation4], 0
    // Predicated region
    $region2: #{tpu_custom_call.1} parent=1 // pred_check
      _
    $region3: #{tpu_custom_call.1} parent=1 // pred_check_branch
      %11 = sbr.rel (0) target = $region5
    $region4: #{tpu_custom_call.1} parent=1 // pred_region
      %s13 = ssub.s32 128, 64
      %14 = vsyncadd [#allocation3], %s13
      %s15 = sshll.u32 [#allocation2], 4
      %s16 = int_to_ptr.vmem [resolvable:$true] %s15
      %21 = dma.hbm_to_vmem [thread:$0]  %s0, 64, %s16, [#allocation3], 64, 64, 4
    $region5: #{tpu_custom_call.1} parent=1 // pred_fallthru
      _
    // Predicated region
    $region6: #{tpu_custom_call.1} parent=1 // pred_check
      _
    $region7: #{tpu_custom_call.1} parent=1 // pred_check_branch
      %23 = sbr.rel (0) target = $region9
    $region8: #{tpu_custom_call.1} parent=1 // pred_region
      %s25 = ssub.s32 128, 64
      %26 = vsyncadd [#allocation6], %s25
      %s27 = sshll.u32 [#allocation5], 4
      %s28 = int_to_ptr.vmem [resolvable:$true] %s27
      %33 = dma.hbm_to_vmem [thread:$0]  %s1, 64, %s28, [#allocation6], 64, 64, 4
    $region9: #{tpu_custom_call.1} parent=1 // pred_fallthru
      _
    // Predicated region
    $region10: #{tpu_custom_call.1} parent=1 // pred_check
      _
    $region11: #{tpu_custom_call.1} parent=1 // pred_check_branch
      %35 = sbr.rel (0) target = $region13
    $region12: #{tpu_custom_call.1} parent=1 // pred_region
      %36 = dma.done [#allocation3], 128
    $region13: #{tpu_custom_call.1} parent=1 // pred_fallthru
      _
    // Predicated region
    $region14: #{tpu_custom_call.1} parent=1 // pred_check
      _
    $region15: #{tpu_custom_call.1} parent=1 // pred_check_branch
      %38 = sbr.rel (0) target = $region17
    $region16: #{tpu_custom_call.1} parent=1 // pred_region
      %39 = dma.done [#allocation6], 128
    $region17: #{tpu_custom_call.1} parent=1 // pred_fallthru
      _
    %v40 = vld [vmem:[#allocation2] sm:$0xff]
    %v41 = vld [vmem:[#allocation5] sm:$0xff]
    %v42 = vsub.f32 %v40, %v41
    %s43 = smul.u32 0, 8
    %v44 = vlaneseq
    %v45 = vshrl.u32 %v44, 7
    %v46 = vstv %s43
    %v47 = vadd.s32 %v45, %v46
    %vm48 = vcmp.lt.s32.totalorder %v47, 4
    %v49 = vsel %vm48, %v42, 0.0
    %v50 = vmul.f32 %v49, %v49
    %v51 = vadd.f32 %v50, 0.0
    %52 = vst [vmem:[#allocation7] sm:$0xff] %v51
    // Predicated region
    $region18: #{tpu_custom_call.1} parent=1 // pred_check
      _
    $region19: #{tpu_custom_call.1} parent=1 // pred_check_branch
      %54 = sbr.rel (0) target = $region21
    $region20: #{tpu_custom_call.1} parent=1 // pred_region
      %s56 = ssub.s32 128, 128
      %57 = vsyncadd [#allocation4], %s56
      %s59 = sshll.u32 [#allocation7], 4
      %s60 = int_to_ptr.vmem [resolvable:$true] %s59
      %62 = dma.vmem_to_hbm [thread:$0]  %s60, 128, %s2, [#allocation4]
    $region21: #{tpu_custom_call.1} parent=1 // pred_fallthru
      _
    // Predicated region
    $region22: #{tpu_custom_call.1} parent=1 // pred_check
      _
    $region23: #{tpu_custom_call.1} parent=1 // pred_check_branch
      %64 = sbr.rel (0) target = $region25
    $region24: #{tpu_custom_call.1} parent=1 // pred_region
      %65 = dma.done [#allocation4], 128
    $region25: #{tpu_custom_call.1} parent=1 // pred_fallthru
      _
    %66 = vsyncpa [#allocation3], 1
    %67 = vsyncpa [#allocation6], 1
    %68 = vsyncpa [#allocation4], 1

</llo_original>
